<compile_context>
chip_gen: v7x
topology: tpu7x:2x2x1
jax: 0.10.0
libtpu: 0.0.40
codegen_flags: <defaults>
</compile_context>

<pallas_src>
import jax
import jax.numpy as jnp
from jax.experimental import pallas as pl
from jax.experimental.pallas import tpu as pltpu


def _round_up(x, m):
    return ((x + m - 1) // m) * m


def _pick_tile_b(B, max_tile=2048, min_tiles=2):
    """Batch tile: <= max_tile rows, >= min_tiles grid steps when batch allows,
    multiple of 8 sublanes, padding waste bounded by < one tile."""
    bp8 = _round_up(B, 8)
    if bp8 <= min_tiles * 8:          # tiny batch: single tile
        return bp8
    n = max(min_tiles, pl.cdiv(bp8, max_tile))
    return _round_up(pl.cdiv(bp8, n), 8)


def game_encoder_kernel(game_ref, w128_ref, w32_ref, bias_ref, out_ref):
    tb = game_ref.shape[0]

    # Packed per-row input: columns 0:17 = features, column 17 = mode index.
    g = game_ref[...]                                               # (TB, 32) f32
    idx = g[:, 17:18].astype(jnp.int32)                             # (TB, 1)
    one_hot = (jax.lax.broadcasted_iota(jnp.int32, (tb, 16), 1)
               == idx).astype(jnp.bfloat16)                         # (TB, 16)

    # Constant slabs (bf16 weights, f32 biases); static, tile-aligned sub-views.
    emb_w3 = w128_ref[0:16, :]                                      # (16, 128) bf16
    w3_bot = w128_ref[16:48, :]                                     # (32, 128)
    w4 = w128_ref[48:176, :]                                        # (128, 128)
    w1 = w32_ref[0:32, :]                                           # (32, 32)
    w2 = w32_ref[32:64, :]                                          # (32, 32)
    b1 = bias_ref[0:1, 0:32]
    b2 = bias_ref[1:2, 0:32]
    b3 = bias_ref[2:3, :]
    b4 = bias_ref[3:4, :]
    gamma = bias_ref[4:5, :]
    beta = bias_ref[5:6, :]

    # game_embedding: Linear(17,32)+ReLU, Linear(32,32)+ReLU  (bf16 MXU, f32 acc)
    h = jnp.dot(g.astype(jnp.bfloat16), w1,
                preferred_element_type=jnp.float32) + b1
    h = jnp.maximum(h, 0.0)
    h = jnp.dot(h.astype(jnp.bfloat16), w2,
                preferred_element_type=jnp.float32) + b2
    h = jnp.maximum(h, 0.0)                                         # (TB, 32) f32

    # concat-free layer 3: one_hot @ (emb @ w3_top) + h @ w3_bot + b3
    f = (jnp.dot(one_hot, emb_w3, preferred_element_type=jnp.float32)
         + jnp.dot(h.astype(jnp.bfloat16), w3_bot,
                   preferred_element_type=jnp.float32)
         + b3)
    f = jnp.maximum(f, 0.0)
    f = jnp.dot(f.astype(jnp.bfloat16), w4,
                preferred_element_type=jnp.float32) + b4            # (TB, 128) f32

    # LayerNorm(128), single-pass moments (independent XLU reductions).
    inv_n = jnp.float32(1.0 / 128.0)
    mean = jnp.sum(f, axis=-1, keepdims=True) * inv_n
    ex2 = jnp.sum(f * f, axis=-1, keepdims=True) * inv_n
    var = ex2 - mean * mean
    out = (f - mean) * jax.lax.rsqrt(var + 1e-5) * gamma + beta
    out_ref[...] = out.astype(out_ref.dtype)


def game_encoder(mode_index, game, params, *, max_tile_b=2048,
                 out_dtype=jnp.float32):
    """mode_index: int (B,), game: float32 (B, 17). Returns (B, 128) out_dtype."""
    B = game.shape[0]
    f32 = jnp.float32

    tile_b = _pick_tile_b(B, max_tile_b)
    n_tiles = pl.cdiv(B, tile_b)
    Bp = n_tiles * tile_b

    # --- packed per-row input slab: features + index column -----------------
    game32 = jnp.zeros((Bp, 32), f32)
    game32 = game32.at[:B, :17].set(game.astype(f32))
    game32 = game32.at[:B, 17].set(mode_index.astype(f32))

    # --- packed constant slabs (tiny one-time XLA ops) -----------------------
    emb_w3 = params["emb"].astype(f32) @ params["w3"][:32].astype(f32)   # (7,128)
    emb_w3 = jnp.zeros((16, 128), f32).at[:7].set(emb_w3)
    slab_w128 = jnp.concatenate(
        [emb_w3, params["w3"][32:], params["w4"]], axis=0
    ).astype(jnp.bfloat16)                                               # (176,128)

    w1p = jnp.zeros((32, 32), f32).at[:17].set(params["w1"])
    slab_w32 = jnp.concatenate([w1p, params["w2"]], axis=0
                               ).astype(jnp.bfloat16)                    # (64,32)

    def pad128(b):
        b = jnp.asarray(b, f32).reshape(1, -1)
        return jnp.zeros((1, 128), f32).at[:, :b.shape[-1]].set(b)

    slab_bias = jnp.concatenate(
        [pad128(params["b1"]), pad128(params["b2"]),
         pad128(params["b3"]), pad128(params["b4"]),
         pad128(params["ln_gamma"]), pad128(params["ln_beta"]),
         jnp.zeros((2, 128), f32)], axis=0)                              # (8,128)

    grid = (n_tiles,)
    in_specs = [
        pl.BlockSpec((tile_b, 32), lambda i: (i, 0)),     # packed features+idx
        pl.BlockSpec((176, 128), lambda i: (0, 0)),       # emb_w3 | w3_bot | w4
        pl.BlockSpec((64, 32), lambda i: (0, 0)),         # w1 | w2
        pl.BlockSpec((8, 128), lambda i: (0, 0)),         # biases / LN params
    ]
    out_spec = pl.BlockSpec((tile_b, 128), lambda i: (i, 0))

    out_bytes = jnp.dtype(out_dtype).itemsize
    weight_bytes = 2 * (176 * 128 + 64 * 32) + 4 * (8 * 128)
    flops_per_row = 2 * (32 * 32 + 32 * 32 + 16 * 128 + 32 * 128 + 128 * 128)
    cost = pl.CostEstimate(
        flops=Bp * flops_per_row,
        transcendentals=Bp,
        bytes_accessed=Bp * (32 * 4 + 128 * out_bytes) + weight_bytes,
    )

    out = pl.pallas_call(
        game_encoder_kernel,
        out_shape=jax.ShapeDtypeStruct((Bp, 128), out_dtype),
        grid=grid,
        in_specs=in_specs,
        out_specs=out_spec,
        compiler_params=pltpu.CompilerParams(
            dimension_semantics=("parallel",),
            vmem_limit_bytes=32 * 1024 * 1024),
        cost_estimate=cost,
    )(game32, slab_w128, slab_w32, slab_bias)

    return out[:B] if Bp != B else out


def init_params(key):
    ks = jax.random.split(key, 8)

    def lin(k, fan_in, fan_out):
        bound = 1.0 / jnp.sqrt(fan_in)
        kw, kb = jax.random.split(k)
        w = jax.random.uniform(kw, (fan_in, fan_out), jnp.float32, -bound, bound)
        b = jax.random.uniform(kb, (1, fan_out), jnp.float32, -bound, bound)
        return w, b

    emb = jax.random.normal(ks[0], (7, 32), jnp.float32)
    w1, b1 = lin(ks[1], 17, 32)
    w2, b2 = lin(ks[2], 32, 32)
    w3, b3 = lin(ks[3], 64, 128)
    w4, b4 = lin(ks[4], 128, 128)
    return dict(
        emb=emb, w1=w1, b1=b1, w2=w2, b2=b2, w3=w3, b3=b3, w4=w4, b4=b4,
        ln_gamma=jnp.ones((1, 128), jnp.float32),
        ln_beta=jnp.zeros((1, 128), jnp.float32),
    )


def game_encoder_ref(mode_index, game, p):
    mode_ebd = p["emb"][mode_index]
    h = jnp.maximum(game @ p["w1"] + p["b1"], 0.0)
    h = jnp.maximum(h @ p["w2"] + p["b2"], 0.0)
    cat = jnp.concatenate([mode_ebd, h], axis=-1)
    f = jnp.maximum(cat @ p["w3"] + p["b3"], 0.0)
    f = f @ p["w4"] + p["b4"]
    mean = jnp.mean(f, axis=-1, keepdims=True)
    var = jnp.mean((f - mean) ** 2, axis=-1, keepdims=True)
    return (f - mean) * jax.lax.rsqrt(var + 1e-5) * p["ln_gamma"] + p["ln_beta"]


if __name__ == "__main__":
    key = jax.random.PRNGKey(0)
    k_params, k_mode, k_game = jax.random.split(key, 3)
    params = init_params(k_params)

    # bf16 MXU operands (f32 accumulate) -> loosened tolerance vs f32 reference.
    ATOL = RTOL = 5e-2

    # Small batch (single tile).
    B = 8
    mode_index = jax.random.randint(k_mode, (B,), 0, 7, dtype=jnp.int32)
    game = jax.random.normal(k_game, (B, 17), jnp.float32)
    out = jax.block_until_ready(game_encoder(mode_index, game, params))
    ref = game_encoder_ref(mode_index, game, params)
    assert out.shape == (B, 128)
    assert jnp.allclose(out, ref, atol=ATOL, rtol=RTOL), "mismatch vs reference"

    # Batch not a multiple of 8 (padding path).
    B2 = 13
    mi2 = jax.random.randint(k_mode, (B2,), 0, 7, dtype=jnp.int32)
    g2 = jax.random.normal(k_game, (B2, 17), jnp.float32)
    out2 = jax.block_until_ready(game_encoder(mi2, g2, params))
    ref2 = game_encoder_ref(mi2, g2, params)
    assert out2.shape == (B2, 128)
    assert jnp.allclose(out2, ref2, atol=ATOL, rtol=RTOL), "mismatch (padded)"

    # Larger batch exercising the multi-tile grid (>= 2 tiles -> v7x dual-TC).
    B3 = 300
    mi3 = jax.random.randint(k_mode, (B3,), 0, 7, dtype=jnp.int32)
    g3 = jax.random.normal(k_game, (B3, 17), jnp.float32)
    out3 = jax.block_until_ready(game_encoder(mi3, g3, params))
    ref3 = game_encoder_ref(mi3, g3, params)
    assert out3.shape == (B3, 128)
    assert jnp.allclose(out3, ref3, atol=ATOL, rtol=RTOL), "mismatch (multi-tile)"

    print("KERNEL_OK")
</pallas_src>

<mosaic_0001>
module attributes {stable_mosaic.version = 11 : i64} {
  func.func @game_encoder_kernel(%arg0: i32, %arg1: memref<8x32xf32, #tpu.memory_space<vmem>>, %arg2: memref<176x128xbf16, #tpu.memory_space<vmem>>, %arg3: memref<64x32xbf16, #tpu.memory_space<vmem>>, %arg4: memref<8x128xf32, #tpu.memory_space<vmem>>, %arg5: memref<8x128xf32, #tpu.memory_space<vmem>>) attributes {dimension_semantics = [#tpu.dimension_semantics<parallel>], iteration_bounds = array<i64: 1>, scalar_prefetch = 0 : i64, scratch_operands = 0 : i64, tpu.core_type = #tpu.core_type<tc>, window_params = [{transform_indices = @transform_0, window_bounds = array<i64: 8, 32>}, {pipeline_mode = #tpu.pipeline_mode<synchronous>, transform_indices = @transform_1, window_bounds = array<i64: 176, 128>}, {pipeline_mode = #tpu.pipeline_mode<synchronous>, transform_indices = @transform_2, window_bounds = array<i64: 64, 32>}, {pipeline_mode = #tpu.pipeline_mode<synchronous>, transform_indices = @transform_3, window_bounds = array<i64: 8, 128>}, {transform_indices = @transform_4, window_bounds = array<i64: 8, 128>}]} {
    %c0 = arith.constant 0 : index
    %c0_0 = arith.constant 0 : index
    %0 = vector.load %arg1[%c0, %c0_0] : memref<8x32xf32, #tpu.memory_space<vmem>>, vector<8x32xf32>
    %1 = vector.extract_strided_slice %0 {offsets = [0, 17], sizes = [8, 1], strides = [1, 1]} : vector<8x32xf32> to vector<8x1xf32>
    %2 = arith.fptosi %1 : vector<8x1xf32> to vector<8x1xi32>
    %3 = tpu.iota {dimensions = array<i32: 1>} : vector<8x16xi32>
    %4 = vector.broadcast %2 : vector<8x1xi32> to vector<8x16xi32>
    %5 = arith.cmpi eq, %3, %4 : vector<8x16xi32>
    %6 = arith.extui %5 : vector<8x16xi1> to vector<8x16xi32>
    %7 = arith.sitofp %6 : vector<8x16xi32> to vector<8x16xf32>
    %8 = arith.truncf %7 : vector<8x16xf32> to vector<8x16xbf16>
    %c0_1 = arith.constant 0 : index
    %c0_2 = arith.constant 0 : index
    %9 = vector.load %arg2[%c0_1, %c0_2] : memref<176x128xbf16, #tpu.memory_space<vmem>>, vector<16x128xbf16>
    %c16 = arith.constant 16 : index
    %c0_3 = arith.constant 0 : index
    %10 = vector.load %arg2[%c16, %c0_3] : memref<176x128xbf16, #tpu.memory_space<vmem>>, vector<32x128xbf16>
    %c48 = arith.constant 48 : index
    %c0_4 = arith.constant 0 : index
    %11 = vector.load %arg2[%c48, %c0_4] : memref<176x128xbf16, #tpu.memory_space<vmem>>, vector<128x128xbf16>
    %c0_5 = arith.constant 0 : index
    %c0_6 = arith.constant 0 : index
    %12 = vector.load %arg3[%c0_5, %c0_6] : memref<64x32xbf16, #tpu.memory_space<vmem>>, vector<32x32xbf16>
    %c32 = arith.constant 32 : index
    %c0_7 = arith.constant 0 : index
    %13 = vector.load %arg3[%c32, %c0_7] : memref<64x32xbf16, #tpu.memory_space<vmem>>, vector<32x32xbf16>
    %c0_8 = arith.constant 0 : index
    %c0_9 = arith.constant 0 : index
    %14 = vector.load %arg4[%c0_8, %c0_9] : memref<8x128xf32, #tpu.memory_space<vmem>>, vector<1x32xf32>
    %c1 = arith.constant 1 : index
    %c0_10 = arith.constant 0 : index
    %15 = vector.load %arg4[%c1, %c0_10] : memref<8x128xf32, #tpu.memory_space<vmem>>, vector<1x32xf32>
    %c2 = arith.constant 2 : index
    %c0_11 = arith.constant 0 : index
    %16 = vector.load %arg4[%c2, %c0_11] : memref<8x128xf32, #tpu.memory_space<vmem>>, vector<1x128xf32>
    %c3 = arith.constant 3 : index
    %c0_12 = arith.constant 0 : index
    %17 = vector.load %arg4[%c3, %c0_12] : memref<8x128xf32, #tpu.memory_space<vmem>>, vector<1x128xf32>
    %c4 = arith.constant 4 : index
    %c0_13 = arith.constant 0 : index
    %18 = vector.load %arg4[%c4, %c0_13] : memref<8x128xf32, #tpu.memory_space<vmem>>, vector<1x128xf32>
    %c5 = arith.constant 5 : index
    %c0_14 = arith.constant 0 : index
    %19 = vector.load %arg4[%c5, %c0_14] : memref<8x128xf32, #tpu.memory_space<vmem>>, vector<1x128xf32>
    %20 = arith.truncf %0 : vector<8x32xf32> to vector<8x32xbf16>
    %cst = arith.constant dense<0.000000e+00> : vector<8x32xf32>
    %21 = tpu.matmul %20, %12, %cst {dimension_numbers = #tpu.dot_dimension_numbers<[1], [0], [0], [1], [0, 0, 1, 1], [], []>} : vector<8x32xbf16>, vector<32x32xbf16>, vector<8x32xf32> -> vector<8x32xf32>
    %22 = vector.broadcast %14 : vector<1x32xf32> to vector<8x32xf32>
    %23 = arith.addf %21, %22 : vector<8x32xf32>
    %cst_15 = arith.constant 0.000000e+00 : f32
    %24 = vector.broadcast %cst_15 : f32 to vector<8x32xf32>
    %25 = arith.maximumf %23, %24 : vector<8x32xf32>
    %26 = arith.truncf %25 : vector<8x32xf32> to vector<8x32xbf16>
    %cst_16 = arith.constant dense<0.000000e+00> : vector<8x32xf32>
    %27 = tpu.matmul %26, %13, %cst_16 {dimension_numbers = #tpu.dot_dimension_numbers<[1], [0], [0], [1], [0, 0, 1, 1], [], []>} : vector<8x32xbf16>, vector<32x32xbf16>, vector<8x32xf32> -> vector<8x32xf32>
    %28 = vector.broadcast %15 : vector<1x32xf32> to vector<8x32xf32>
    %29 = arith.addf %27, %28 : vector<8x32xf32>
    %cst_17 = arith.constant 0.000000e+00 : f32
    %30 = vector.broadcast %cst_17 : f32 to vector<8x32xf32>
    %31 = arith.maximumf %29, %30 : vector<8x32xf32>
    %cst_18 = arith.constant dense<0.000000e+00> : vector<8x128xf32>
    %32 = tpu.matmul %8, %9, %cst_18 {dimension_numbers = #tpu.dot_dimension_numbers<[1], [0], [0], [1], [0, 0, 1, 1], [], []>} : vector<8x16xbf16>, vector<16x128xbf16>, vector<8x128xf32> -> vector<8x128xf32>
    %33 = arith.truncf %31 : vector<8x32xf32> to vector<8x32xbf16>
    %cst_19 = arith.constant dense<0.000000e+00> : vector<8x128xf32>
    %34 = tpu.matmul %33, %10, %cst_19 {dimension_numbers = #tpu.dot_dimension_numbers<[1], [0], [0], [1], [0, 0, 1, 1], [], []>} : vector<8x32xbf16>, vector<32x128xbf16>, vector<8x128xf32> -> vector<8x128xf32>
    %35 = arith.addf %32, %34 : vector<8x128xf32>
    %36 = vector.broadcast %16 : vector<1x128xf32> to vector<8x128xf32>
    %37 = arith.addf %35, %36 : vector<8x128xf32>
    %cst_20 = arith.constant 0.000000e+00 : f32
    %38 = vector.broadcast %cst_20 : f32 to vector<8x128xf32>
    %39 = arith.maximumf %37, %38 : vector<8x128xf32>
    %40 = arith.truncf %39 : vector<8x128xf32> to vector<8x128xbf16>
    %cst_21 = arith.constant dense<0.000000e+00> : vector<8x128xf32>
    %41 = tpu.matmul %40, %11, %cst_21 {dimension_numbers = #tpu.dot_dimension_numbers<[1], [0], [0], [1], [0, 0, 1, 1], [], []>} : vector<8x128xbf16>, vector<128x128xbf16>, vector<8x128xf32> -> vector<8x128xf32>
    %42 = vector.broadcast %17 : vector<1x128xf32> to vector<8x128xf32>
    %43 = arith.addf %41, %42 : vector<8x128xf32>
    %cst_22 = arith.constant dense<0.000000e+00> : vector<8xf32>
    %44 = vector.multi_reduction <add>, %43, %cst_22 [1] : vector<8x128xf32> to vector<8xf32>
    %45 = vector.shape_cast %44 : vector<8xf32> to vector<8x1xf32>
    %cst_23 = arith.constant 7.812500e-03 : f32
    %46 = vector.broadcast %cst_23 : f32 to vector<8x1xf32>
    %47 = arith.mulf %45, %46 : vector<8x1xf32>
    %48 = arith.mulf %43, %43 : vector<8x128xf32>
    %cst_24 = arith.constant dense<0.000000e+00> : vector<8xf32>
    %49 = vector.multi_reduction <add>, %48, %cst_24 [1] : vector<8x128xf32> to vector<8xf32>
    %50 = vector.shape_cast %49 : vector<8xf32> to vector<8x1xf32>
    %cst_25 = arith.constant 7.812500e-03 : f32
    %51 = vector.broadcast %cst_25 : f32 to vector<8x1xf32>
    %52 = arith.mulf %50, %51 : vector<8x1xf32>
    %53 = arith.mulf %47, %47 : vector<8x1xf32>
    %54 = arith.subf %52, %53 : vector<8x1xf32>
    %55 = vector.broadcast %47 : vector<8x1xf32> to vector<8x128xf32>
    %56 = arith.subf %43, %55 : vector<8x128xf32>
    %cst_26 = arith.constant 9.99999974E-6 : f32
    %57 = vector.broadcast %cst_26 : f32 to vector<8x1xf32>
    %58 = arith.addf %54, %57 : vector<8x1xf32>
    %59 = math.rsqrt %58 : vector<8x1xf32>
    %60 = vector.broadcast %59 : vector<8x1xf32> to vector<8x128xf32>
    %61 = arith.mulf %56, %60 : vector<8x128xf32>
    %62 = vector.broadcast %18 : vector<1x128xf32> to vector<8x128xf32>
    %63 = arith.mulf %61, %62 : vector<8x128xf32>
    %64 = vector.broadcast %19 : vector<1x128xf32> to vector<8x128xf32>
    %65 = arith.addf %63, %64 : vector<8x128xf32>
    %c0_27 = arith.constant 0 : index
    %c0_28 = arith.constant 0 : index
    %66 = vector.load %arg5[%c0_27, %c0_28] : memref<8x128xf32, #tpu.memory_space<vmem>>, vector<8x128xf32>
    tpu.vector_store %arg5[%c0_27, %c0_28], %65 {strides = array<i32>} : memref<8x128xf32, #tpu.memory_space<vmem>>, vector<8x128xf32>,
    return
  }
  func.func @transform_0(%arg0: i32) -> (i32, i32) {
    %c0_i32 = arith.constant 0 : i32
    %c0_i32_0 = arith.constant 0 : i32
    return %arg0, %c0_i32 : i32, i32
  }
  func.func @transform_1(%arg0: i32) -> (i32, i32) {
    %c0_i32 = arith.constant 0 : i32
    %c0_i32_0 = arith.constant 0 : i32
    %c0_i32_1 = arith.constant 0 : i32
    return %c0_i32, %c0_i32_0 : i32, i32
  }
  func.func @transform_2(%arg0: i32) -> (i32, i32) {
    %c0_i32 = arith.constant 0 : i32
    %c0_i32_0 = arith.constant 0 : i32
    %c0_i32_1 = arith.constant 0 : i32
    return %c0_i32, %c0_i32_0 : i32, i32
  }
  func.func @transform_3(%arg0: i32) -> (i32, i32) {
    %c0_i32 = arith.constant 0 : i32
    %c0_i32_0 = arith.constant 0 : i32
    %c0_i32_1 = arith.constant 0 : i32
    return %c0_i32, %c0_i32_0 : i32, i32
  }
  func.func @transform_4(%arg0: i32) -> (i32, i32) {
    %c0_i32 = arith.constant 0 : i32
    %c0_i32_0 = arith.constant 0 : i32
    return %arg0, %c0_i32 : i32, i32
  }
}

</mosaic_0001>

<llo_original>
// kernel: tpu_custom_call.1
$region0: #{tpu_custom_call.1}
  #allocation0 [shape = 'u32[]', space=smem, size = 0x4, offset = 0x4, fixed_abs, tag = 'smem constant byte address 0x4 - core index']
  #allocation1 [shape = 'u32[144,128]{1,0:T(1,128)}', space=vmem, size = 0x12000, scoped, tag = 'internal scratch']
  %s0 = inlined_call_operand.vmem [shape: f32[8,32], index: 0, kind: input, shape index: {}]
  %s1 = inlined_call_operand.hbm [shape: bf16[176,128], index: 1, kind: input, shape index: {}]
  %s2 = inlined_call_operand.vmem [shape: bf16[64,32], index: 2, kind: input, shape index: {}]
  %s3 = inlined_call_operand.vmem [shape: f32[8,128], index: 3, kind: input, shape index: {}]
  %s4 = inlined_call_operand.hbm [shape: f32[8,128], index: 4, kind: output, shape index: {}]
  %s5 = sld [smem:[#allocation0]]
  $region30: #{tpu_custom_call.1} parent=0
    _
  %s7 = ssub.s32 1, %s5
  %s8 = scalar_select 0, %s7, %s5
  $region1: #{tpu_custom_call.1} parent=0
    #allocation2 [shape = 'u8[45056]{0}', space=vmem, size = 0xb000, scoped, tag = 'input window, operand 1, single buffered']
    #allocation3 [shape = 's32[1]{0}', space=sflag, size = 0x4, scoped, tag = 'scoped memory for tpu_custom_call.1']
    #allocation4 [shape = 's32[1]{0}', space=sflag, size = 0x4, scoped, tag = 'scoped memory for tpu_custom_call.1']
    #allocation5 [shape = 'u8[4096]{0}', space=vmem, size = 0x1000, scoped, tag = 'output window, operand 0, single buffered']
    %9 = vsyncpa [#allocation3], 0
    %10 = vsyncpa [#allocation4], 0
    // Predicated region
    $region2: #{tpu_custom_call.1} parent=1 // pred_check
      _
    $region3: #{tpu_custom_call.1} parent=1 // pred_check_branch
      %12 = sbr.rel (0) target = $region5
    $region4: #{tpu_custom_call.1} parent=1 // pred_region
      _
    $region5: #{tpu_custom_call.1} parent=1 // pred_fallthru
      _
    // Predicated region
    $region6: #{tpu_custom_call.1} parent=1 // pred_check
      _
    $region7: #{tpu_custom_call.1} parent=1 // pred_check_branch
      %14 = sbr.rel (0) target = $region9
    $region8: #{tpu_custom_call.1} parent=1 // pred_region
      %s16 = ssub.s32 1408, 1408
      %17 = vsyncadd [#allocation3], %s16
      %s18 = sshll.u32 [#allocation2], 4
      %s19 = int_to_ptr.vmem [resolvable:$true] %s18
      %24 = dma.hbm_to_vmem [thread:$0]  %s1, 1408, %s19, [#allocation3], 64, 64, 4
    $region9: #{tpu_custom_call.1} parent=1 // pred_fallthru
      _
    // Predicated region
    $region10: #{tpu_custom_call.1} parent=1 // pred_check
      _
    $region11: #{tpu_custom_call.1} parent=1 // pred_check_branch
      %26 = sbr.rel (0) target = $region13
    $region12: #{tpu_custom_call.1} parent=1 // pred_region
      _
    $region13: #{tpu_custom_call.1} parent=1 // pred_fallthru
      _
    // Predicated region
    $region14: #{tpu_custom_call.1} parent=1 // pred_check
      _
    $region15: #{tpu_custom_call.1} parent=1 // pred_check_branch
      %28 = sbr.rel (0) target = $region17
    $region16: #{tpu_custom_call.1} parent=1 // pred_region
      _
    $region17: #{tpu_custom_call.1} parent=1 // pred_fallthru
      _
    // Predicated region
    $region18: #{tpu_custom_call.1} parent=1 // pred_check
      _
    $region19: #{tpu_custom_call.1} parent=1 // pred_check_branch
      %30 = sbr.rel (0) target = $region21
    $region20: #{tpu_custom_call.1} parent=1 // pred_region
      %31 = dma.done [#allocation3], 1408
    $region21: #{tpu_custom_call.1} parent=1 // pred_fallthru
      _
    %v33 = vld [vmem:[%s0] sm:$0xff]
    %v34 = vcvt.f32.s32.to.zero.pseudo %v33
    %v35 = vlaneseq
    %v36 = vand.u32 %v35, 127
    %37 = vset.pattern.permute.xlu0 17
    %38 = vperm.xlu0 %37, %v34
    %v39 = vpop.permute.xlu0 %38
    %vm40 = vcmp.eq.s32.totalorder %v36, %v39
    %v41 = vsel %vm40, 1, 0
    %v42 = vcvt.s32.f32 %v41
    %v43 = vpack.c.bf16 %v42, %v42
    %v44 = vld [vmem:[#allocation2] sm:$0xf]
    %v45 = vld [vmem:[#allocation2 + $0x4] sm:$0xf]
    %v46 = vld [vmem:[#allocation2 + $0x8] sm:$0xf]
    %v47 = vld [vmem:[#allocation2 + $0xc] sm:$0xf]
    %v48 = vld [vmem:[#allocation2 + $0x10] sm:$0xf]
    %v49 = vld [vmem:[#allocation2 + $0x14] sm:$0xf]
    %v50 = vld [vmem:[#allocation2 + $0x18] sm:$0xf]
    %v51 = vld [vmem:[#allocation2 + $0x1c] sm:$0xf]
    %v52 = vld [vmem:[#allocation2 + $0x20] sm:$0xf]
    %v53 = vld [vmem:[#allocation2 + $0x24] sm:$0xf]
    %v54 = vld [vmem:[#allocation2 + $0x28] sm:$0xf]
    %v55 = vld [vmem:[#allocation2 + $0x2c] sm:$0xf]
    %v56 = vld [vmem:[#allocation2 + $0x30] sm:$0xf]
    %v57 = vld [vmem:[#allocation2 + $0x34] sm:$0xf]
    %v58 = vld [vmem:[#allocation2 + $0x38] sm:$0xf]
    %v59 = vld [vmem:[#allocation2 + $0x3c] sm:$0xf]
    %v60 = vld [vmem:[#allocation2 + $0x40] sm:$0xf]
    %v61 = vld [vmem:[#allocation2 + $0x44] sm:$0xf]
    %v62 = vld [vmem:[#allocation2 + $0x48] sm:$0xf]
    %v63 = vld [vmem:[#allocation2 + $0x4c] sm:$0xf]
    %v64 = vld [vmem:[#allocation2 + $0x50] sm:$0xf]
    %v65 = vld [vmem:[#allocation2 + $0x54] sm:$0xf]
    %v66 = vld [vmem:[%s2] sm:$0xf]
    %v67 = vld [vmem:[%s2 + $0x4] sm:$0xf]
    %v68 = vld [vmem:[%s2 + $0x8] sm:$0xf]
    %v69 = vld [vmem:[%s2 + $0xc] sm:$0xf]
    %v70 = vld [vmem:[%s2 + $0x10] sm:$0xf]
    %v71 = vld [vmem:[%s2 + $0x14] sm:$0xf]
    %v72 = vld [vmem:[%s2 + $0x18] sm:$0xf]
    %v73 = vld [vmem:[%s2 + $0x1c] sm:$0xf]
    %v74 = vld [vmem:[%s3] sm:$0x1]
    %v75 = vld [vmem:[%s3 + $0x1] sm:$0x1]
    %v76 = vld [vmem:[%s3 + $0x2] sm:$0x1]
    %v77 = vld [vmem:[%s3 + $0x3] sm:$0x1]
    %v78 = vld [vmem:[%s3 + $0x4] sm:$0x1]
    %v79 = vld [vmem:[%s3 + $0x5] sm:$0x1]
    %v80 = vpack.c.bf16 %v33, %v33
    %v81 = vlaneseq
    %v82 = vshrl.u32 %v81, 7
    %v83 = vsub.s32 0, %v82
    %v84 = vrot.slane %v74, %v83
    %v89 = vunpack.c.l.b16 %v66
    %v90 = vunpack.c.l.b16 %v67
    %v91 = vunpack.c.l.b16 %v68
    %v92 = vunpack.c.l.b16 %v69
    %v93 = vpack.c.b16 %v90, %v89
    %v94 = vpack.c.b16 %v92, %v91
    %vm97 = vcmask 261120
    %v99 = vsel %vm97, %v80, 0
    %101 = vmatprep.subr.bf16.mxu0 0
    %102 = vmatpush1.bf16.msra.mxu0 %v93
    %103 = vmatprep.subr.bf16.mxu0 0
    %104 = vmatpush1.bf16.msra.mxu0 %v94
    %105 = vmatprep.subr.bf16.mxu0 0
    %106 = vmatpush1.bf16.msra.mxu0 0
    %107 = vmatprep.subr.bf16.mxu0 0
    %108 = vmatpush1.bf16.msra.mxu0 0
    %109 = vmatprep.subr.bf16.mxu0 0
    %110 = vmatpush1.bf16.msra.mxu0 0
    %111 = vmatprep.subr.bf16.mxu0 0
    %112 = vmatpush1.bf16.msra.mxu0 0
    %113 = vmatprep.subr.bf16.mxu0 0
    %114 = vmatpush1.bf16.msra.mxu0 0
    %115 = vmatprep.subr.bf16.mxu0 0
    %116 = vmatpush1.bf16.msra.mxu0 0
    %117 = vmatprep.subr.bf16.mxu0 0
    %118 = vmatpush1.bf16.msra.mxu0 0
    %119 = vmatprep.subr.bf16.mxu0 0
    %120 = vmatpush1.bf16.msra.mxu0 0
    %121 = vmatprep.subr.bf16.mxu0 0
    %122 = vmatpush1.bf16.msra.mxu0 0
    %123 = vmatprep.subr.bf16.mxu0 0
    %124 = vmatpush1.bf16.msra.mxu0 0
    %125 = vmatprep.subr.bf16.mxu0 0
    %126 = vmatpush1.bf16.msra.mxu0 0
    %127 = vmatprep.subr.bf16.mxu0 0
    %128 = vmatpush1.bf16.msra.mxu0 0
    %129 = vmatprep.subr.bf16.mxu0 0
    %130 = vmatpush1.bf16.msra.mxu0 0
    %131 = vmatprep.subr.bf16.mxu0 0
    %132 = vmatpush1.bf16.msra.mxu0 0
    %133 = vmatprep.mubr.bf16.mxu0 0
    %134 = vmatmul.mubr.bf16.gmra.mrb[0].mxu0 %v99
    %v135 = vpop.f32.mrb[0].mxu0
    %v136 = vadd.f32 %v84, %v135
    %v137 = vpop.f32.mrb[0].mxu0
    %v138 = vpop.f32.mrb[0].mxu0
    %v139 = vpop.f32.mrb[0].mxu0
    %140 = vdwg.mxu0
    %v141 = vmax.f32 %v136, 0.0
    %v142 = vpack.c.bf16 %v141, %v141
    %v143 = vlaneseq
    %v144 = vshrl.u32 %v143, 7
    %v145 = vsub.s32 0, %v144
    %v146 = vrot.slane %v75, %v145
    %v151 = vunpack.c.l.b16 %v70
    %v152 = vunpack.c.l.b16 %v71
    %v153 = vunpack.c.l.b16 %v72
    %v154 = vunpack.c.l.b16 %v73
    %v155 = vpack.c.b16 %v152, %v151
    %v156 = vpack.c.b16 %v154, %v153
    %v160 = vsel %vm97, %v142, 0
    %162 = vmatprep.subr.bf16.mxu0 0
    %163 = vmatpush1.bf16.msra.mxu0 %v155
    %164 = vmatprep.subr.bf16.mxu0 0
    %165 = vmatpush1.bf16.msra.mxu0 %v156
    %166 = vmatprep.subr.bf16.mxu0 0
    %167 = vmatpush1.bf16.msra.mxu0 0
    %168 = vmatprep.subr.bf16.mxu0 0
    %169 = vmatpush1.bf16.msra.mxu0 0
    %170 = vmatprep.subr.bf16.mxu0 0
    %171 = vmatpush1.bf16.msra.mxu0 0
    %172 = vmatprep.subr.bf16.mxu0 0
    %173 = vmatpush1.bf16.msra.mxu0 0
    %174 = vmatprep.subr.bf16.mxu0 0
    %175 = vmatpush1.bf16.msra.mxu0 0
    %176 = vmatprep.subr.bf16.mxu0 0
    %177 = vmatpush1.bf16.msra.mxu0 0
    %178 = vmatprep.subr.bf16.mxu0 0
    %179 = vmatpush1.bf16.msra.mxu0 0
    %180 = vmatprep.subr.bf16.mxu0 0
    %181 = vmatpush1.bf16.msra.mxu0 0
    %182 = vmatprep.subr.bf16.mxu0 0
    %183 = vmatpush1.bf16.msra.mxu0 0
    %184 = vmatprep.subr.bf16.mxu0 0
    %185 = vmatpush1.bf16.msra.mxu0 0
    %186 = vmatprep.subr.bf16.mxu0 0
    %187 = vmatpush1.bf16.msra.mxu0 0
    %188 = vmatprep.subr.bf16.mxu0 0
    %189 = vmatpush1.bf16.msra.mxu0 0
    %190 = vmatprep.subr.bf16.mxu0 0
    %191 = vmatpush1.bf16.msra.mxu0 0
    %192 = vmatprep.subr.bf16.mxu0 0
    %193 = vmatpush1.bf16.msra.mxu0 0
    %194 = vmatprep.mubr.bf16.mxu0 0
    %195 = vmatmul.mubr.bf16.gmra.mrb[0].mxu0 %v160
    %v196 = vpop.f32.mrb[0].mxu0
    %v197 = vadd.f32 %v146, %v196
    %v198 = vpop.f32.mrb[0].mxu0
    %v199 = vpop.f32.mrb[0].mxu0
    %v200 = vpop.f32.mrb[0].mxu0
    %201 = vdwg.mxu0
    %v202 = vmax.f32 %v197, 0.0
    %v203 = vpack.c.bf16 %v202, %v202
    %v208 = vunpack.c.l.b16 %v46
    %v209 = vunpack.c.l.b16 %v47
    %v210 = vunpack.c.l.b16 %v48
    %v211 = vunpack.c.l.b16 %v49
    %v212 = vpack.c.b16 %v209, %v208
    %v213 = vpack.c.b16 %v211, %v210
    %v217 = vsel %vm97, %v203, 0
    %219 = vmatprep.subr.bf16.mxu0 0
    %220 = vmatpush1.bf16.msra.mxu0 %v212
    %221 = vmatprep.subr.bf16.mxu0 0
    %222 = vmatpush1.bf16.msra.mxu0 %v213
    %223 = vmatprep.subr.bf16.mxu0 0
    %224 = vmatpush1.bf16.msra.mxu0 0
    %225 = vmatprep.subr.bf16.mxu0 0
    %226 = vmatpush1.bf16.msra.mxu0 0
    %227 = vmatprep.subr.bf16.mxu0 0
    %228 = vmatpush1.bf16.msra.mxu0 0
    %229 = vmatprep.subr.bf16.mxu0 0
    %230 = vmatpush1.bf16.msra.mxu0 0
    %231 = vmatprep.subr.bf16.mxu0 0
    %232 = vmatpush1.bf16.msra.mxu0 0
    %233 = vmatprep.subr.bf16.mxu0 0
    %234 = vmatpush1.bf16.msra.mxu0 0
    %235 = vmatprep.subr.bf16.mxu0 0
    %236 = vmatpush1.bf16.msra.mxu0 0
    %237 = vmatprep.subr.bf16.mxu0 0
    %238 = vmatpush1.bf16.msra.mxu0 0
    %239 = vmatprep.subr.bf16.mxu0 0
    %240 = vmatpush1.bf16.msra.mxu0 0
    %241 = vmatprep.subr.bf16.mxu0 0
    %242 = vmatpush1.bf16.msra.mxu0 0
    %243 = vmatprep.subr.bf16.mxu0 0
    %244 = vmatpush1.bf16.msra.mxu0 0
    %245 = vmatprep.subr.bf16.mxu0 0
    %246 = vmatpush1.bf16.msra.mxu0 0
    %247 = vmatprep.subr.bf16.mxu0 0
    %248 = vmatpush1.bf16.msra.mxu0 0
    %249 = vmatprep.subr.bf16.mxu0 0
    %250 = vmatpush1.bf16.msra.mxu0 0
    %251 = vmatprep.mubr.bf16.mxu0 0
    %252 = vmatmul.mubr.bf16.gmra.mrb[0].mxu0 %v217
    %v253 = vpop.f32.mrb[0].mxu0
    %v254 = vadd.f32 0.0, %v253
    %v255 = vpop.f32.mrb[0].mxu0
    %v256 = vpop.f32.mrb[0].mxu0
    %v257 = vpop.f32.mrb[0].mxu0
    %258 = vdwg.mxu0
    %v261 = vunpack.c.l.b16 %v44
    %v262 = vunpack.c.l.b16 %v45
    %v263 = vpack.c.b16 %v262, %v261
    %vm265 = vcmask 130048
    %v267 = vsel %vm265, %v43, 0
    %269 = vmatprep.subr.bf16.mxu0 0
    %270 = vmatpush1.bf16.msra.mxu0 %v263
    %271 = vmatprep.subr.bf16.mxu0 0
    %272 = vmatpush1.bf16.msra.mxu0 0
    %273 = vmatprep.subr.bf16.mxu0 0
    %274 = vmatpush1.bf16.msra.mxu0 0
    %275 = vmatprep.subr.bf16.mxu0 0
    %276 = vmatpush1.bf16.msra.mxu0 0
    %277 = vmatprep.subr.bf16.mxu0 0
    %278 = vmatpush1.bf16.msra.mxu0 0
    %279 = vmatprep.subr.bf16.mxu0 0
    %280 = vmatpush1.bf16.msra.mxu0 0
    %281 = vmatprep.subr.bf16.mxu0 0
    %282 = vmatpush1.bf16.msra.mxu0 0
    %283 = vmatprep.subr.bf16.mxu0 0
    %284 = vmatpush1.bf16.msra.mxu0 0
    %285 = vmatprep.subr.bf16.mxu0 0
    %286 = vmatpush1.bf16.msra.mxu0 0
    %287 = vmatprep.subr.bf16.mxu0 0
    %288 = vmatpush1.bf16.msra.mxu0 0
    %289 = vmatprep.subr.bf16.mxu0 0
    %290 = vmatpush1.bf16.msra.mxu0 0
    %291 = vmatprep.subr.bf16.mxu0 0
    %292 = vmatpush1.bf16.msra.mxu0 0
    %293 = vmatprep.subr.bf16.mxu0 0
    %294 = vmatpush1.bf16.msra.mxu0 0
    %295 = vmatprep.subr.bf16.mxu0 0
    %296 = vmatpush1.bf16.msra.mxu0 0
    %297 = vmatprep.subr.bf16.mxu0 0
    %298 = vmatpush1.bf16.msra.mxu0 0
    %299 = vmatprep.subr.bf16.mxu0 0
    %300 = vmatpush1.bf16.msra.mxu0 0
    %301 = vmatprep.mubr.bf16.mxu0 0
    %302 = vmatmul.mubr.bf16.gmra.mrb[0].mxu0 %v267
    %v303 = vpop.f32.mrb[0].mxu0
    %v304 = vadd.f32 %v254, %v303
    %v305 = vpop.f32.mrb[0].mxu0
    %v306 = vpop.f32.mrb[0].mxu0
    %v307 = vpop.f32.mrb[0].mxu0
    %308 = vdwg.mxu0
    %v309 = vlaneseq
    %v310 = vshrl.u32 %v309, 7
    %v311 = vsub.s32 0, %v310
    %v312 = vrot.slane %v76, %v311
    %v313 = vadd.f32 %v304, %v312
    %v314 = vmax.f32 %v313, 0.0
    %v315 = vpack.c.bf16 %v314, %v314
    %v316 = vlaneseq
    %v317 = vshrl.u32 %v316, 7
    %v318 = vsub.s32 0, %v317
    %v319 = vrot.slane %v77, %v318
    %v336 = vunpack.c.l.b16 %v50
    %v337 = vunpack.c.l.b16 %v51
    %v338 = vunpack.c.l.b16 %v52
    %v339 = vunpack.c.l.b16 %v53
    %v340 = vunpack.c.l.b16 %v54
    %v341 = vunpack.c.l.b16 %v55
    %v342 = vunpack.c.l.b16 %v56
    %v343 = vunpack.c.l.b16 %v57
    %v344 = vunpack.c.l.b16 %v58
    %v345 = vunpack.c.l.b16 %v59
    %v346 = vunpack.c.l.b16 %v60
    %v347 = vunpack.c.l.b16 %v61
    %v348 = vunpack.c.l.b16 %v62
    %v349 = vunpack.c.l.b16 %v63
    %v350 = vunpack.c.l.b16 %v64
    %v351 = vunpack.c.l.b16 %v65
    %v352 = vpack.c.b16 %v337, %v336
    %v353 = vpack.c.b16 %v339, %v338
    %v354 = vpack.c.b16 %v341, %v340
    %v355 = vpack.c.b16 %v343, %v342
    %v356 = vpack.c.b16 %v345, %v344
    %v357 = vpack.c.b16 %v347, %v346
    %v358 = vpack.c.b16 %v349, %v348
    %v359 = vpack.c.b16 %v351, %v350
    %368 = vmatprep.subr.bf16.mxu0 0
    %369 = vmatpush1.bf16.msra.mxu0 %v352
    %370 = vmatprep.subr.bf16.mxu0 0
    %371 = vmatpush1.bf16.msra.mxu0 %v353
    %372 = vmatprep.subr.bf16.mxu0 0
    %373 = vmatpush1.bf16.msra.mxu0 %v354
    %374 = vmatprep.subr.bf16.mxu0 0
    %375 = vmatpush1.bf16.msra.mxu0 %v355
    %376 = vmatprep.subr.bf16.mxu0 0
    %377 = vmatpush1.bf16.msra.mxu0 %v356
    %378 = vmatprep.subr.bf16.mxu0 0
    %379 = vmatpush1.bf16.msra.mxu0 %v357
    %380 = vmatprep.subr.bf16.mxu0 0
    %381 = vmatpush1.bf16.msra.mxu0 %v358
    %382 = vmatprep.subr.bf16.mxu0 0
    %383 = vmatpush1.bf16.msra.mxu0 %v359
    %384 = vmatprep.subr.bf16.mxu0 0
    %385 = vmatpush1.bf16.msra.mxu0 0
    %386 = vmatprep.subr.bf16.mxu0 0
    %387 = vmatpush1.bf16.msra.mxu0 0
    %388 = vmatprep.subr.bf16.mxu0 0
    %389 = vmatpush1.bf16.msra.mxu0 0
    %390 = vmatprep.subr.bf16.mxu0 0
    %391 = vmatpush1.bf16.msra.mxu0 0
    %392 = vmatprep.subr.bf16.mxu0 0
    %393 = vmatpush1.bf16.msra.mxu0 0
    %394 = vmatprep.subr.bf16.mxu0 0
    %395 = vmatpush1.bf16.msra.mxu0 0
    %396 = vmatprep.subr.bf16.mxu0 0
    %397 = vmatpush1.bf16.msra.mxu0 0
    %398 = vmatprep.subr.bf16.mxu0 0
    %399 = vmatpush1.bf16.msra.mxu0 0
    %400 = vmatprep.mubr.bf16.mxu0 0
    %401 = vmatmul.mubr.bf16.gmra.mrb[0].mxu0 %v315
    %v402 = vpop.f32.mrb[0].mxu0
    %v403 = vadd.f32 %v319, %v402
    %v404 = vpop.f32.mrb[0].mxu0
    %v405 = vpop.f32.mrb[0].mxu0
    %v406 = vpop.f32.mrb[0].mxu0
    %407 = vdwg.mxu0
    %408 = vadd.xlane.f32.xlu0 %v403
    %v409 = vpop.xlane.xlu0 %408
    %v410 = vmul.f32 %v409, 0.0078125
    %v411 = vmul.f32 %v403, %v403
    %412 = vadd.xlane.f32.xlu0 %v411
    %v413 = vpop.xlane.xlu0 %412
    %v414 = vmul.f32 %v413, 0.0078125
    %v415 = vmul.f32 %v410, %v410
    %v416 = vsub.f32 %v414, %v415
    %v417 = vsub.f32 %v403, %v410
    %v418 = vadd.f32 %v416, 1e-05
    %v419 = vrsqrt.pop %v418
    %v420 = vmul.f32 %v417, %v419
    %v421 = vlaneseq
    %v422 = vshrl.u32 %v421, 7
    %v423 = vsub.s32 0, %v422
    %v424 = vrot.slane %v78, %v423
    %v425 = vmul.f32 %v420, %v424
    %v426 = vlaneseq
    %v427 = vshrl.u32 %v426, 7
    %v428 = vsub.s32 0, %v427
    %v429 = vrot.slane %v79, %v428
    %v430 = vadd.f32 %v425, %v429
    %431 = vst [vmem:[#allocation5] sm:$0xff] %v430
    // Predicated region
    $region22: #{tpu_custom_call.1} parent=1 // pred_check
      _
    $region23: #{tpu_custom_call.1} parent=1 // pred_check_branch
      %433 = sbr.rel (0) target = $region25
    $region24: #{tpu_custom_call.1} parent=1 // pred_region
      %s435 = ssub.s32 128, 128
      %436 = vsyncadd [#allocation4], %s435
      %s438 = sshll.u32 [#allocation5], 4
      %s439 = int_to_ptr.vmem [resolvable:$true] %s438
      %441 = dma.vmem_to_hbm [thread:$0]  %s439, 128, %s4, [#allocation4]
    $region25: #{tpu_custom_call.1} parent=1 // pred_fallthru
      _
    // Predicated region
    $region26: #{tpu_custom_call.1} parent=1 // pred_check
      _
    $region27: #{tpu_custom_call.1} parent=1 // pred_check_branch
      %443 = sbr.rel (0) target = $region29
    $region28: #{tpu_custom_call.1} parent=1 // pred_region
      %444 = dma.done [#allocation4], 128
    $region29: #{tpu_custom_call.1} parent=1 // pred_fallthru
      _
    %445 = vsyncpa [#allocation3], 1
    %446 = vsyncpa [#allocation4], 1

</llo_original>
